<compile_context>
chip_gen: v6e
topology: v6e:2x2x1
jax: 0.10.0
libtpu: 0.0.40
codegen_flags: <defaults>
</compile_context>

<pallas_src>
import math

import jax
import jax.numpy as jnp
from jax import lax
from jax.experimental import pallas as pl
from jax.experimental.pallas import tpu as pltpu


# ---------------------------------------------------------------------------
# Parameter construction (deterministic, mirrors GaussianSmoothing.__init__)
# ---------------------------------------------------------------------------
def make_gaussian_weight(channels: int, kernel_size: int, sigma: float, dim: int = 2):
    """Returns depthwise conv weight of shape (channels, 1, K, K) for dim=2."""
    ks = [kernel_size] * dim
    sigmas = [sigma] * dim
    grids = jnp.meshgrid(
        *[jnp.arange(s, dtype=jnp.float32) for s in ks], indexing="ij"
    )
    kernel = jnp.ones((), jnp.float32)
    for size, std, mgrid in zip(ks, sigmas, grids):
        mean = (size - 1) / 2.0
        kernel = kernel * (
            1.0 / (std * math.sqrt(2.0 * math.pi))
            * jnp.exp(-(((mgrid - mean) / std) ** 2) / 2.0)
        )
    kernel = kernel / jnp.sum(kernel)
    kernel = kernel.reshape((1, 1) + kernel.shape)            # (1, 1, K, K)
    kernel = jnp.tile(kernel, (channels,) + (1,) * (kernel.ndim - 1))
    return kernel                                             # (C, 1, K, K)


# ---------------------------------------------------------------------------
# Pallas kernel: fused separable depthwise 2D "valid" conv, native NCHW layout
# ---------------------------------------------------------------------------
def _gaussian_sep_kernel(w_ref, x_ref, o_ref):
    # w_ref : SMEM (2, K) f32   row 0 = vertical taps, row 1 = horizontal taps
    # x_ref : VMEM (TB, H, W)   TB = tile of flattened (N*C); W = lane axis
    # o_ref : VMEM (TB, Hout, Wout)
    K = w_ref.shape[1]
    Hout = o_ref.shape[1]
    Wout = o_ref.shape[2]

    # Row-chunked fused passes: bounded register working set, no VMEM scratch.
    ROWS = 8 if Hout >= 8 else Hout
    n_full = Hout // ROWS
    rem = Hout - n_full * ROWS

    def do_rows(h0, nrows):
        # Vertical taps: per-tap ref slices (sublane-offset loads), upcast per
        # slice -- the block is never materialized as one big f32 value.
        acc = w_ref[0, 0] * x_ref[:, pl.ds(h0, nrows), :].astype(jnp.float32)
        for i in range(1, K):
            acc = acc + w_ref[0, i] * x_ref[:, pl.ds(h0 + i, nrows), :].astype(
                jnp.float32
            )
        # Horizontal taps: static lane-offset extracts of the register value;
        # single store per row chunk (only the final store is lane-masked).
        out = w_ref[1, 0] * acc[:, :, 0:Wout]
        for j in range(1, K):
            out = out + w_ref[1, j] * acc[:, :, j:j + Wout]
        o_ref[:, pl.ds(h0, nrows), :] = out.astype(o_ref.dtype)

    if n_full == 1:
        do_rows(0, ROWS)
    elif n_full > 1:
        def body(c, carry):
            do_rows(pl.multiple_of(c * ROWS, ROWS), ROWS)
            return carry
        lax.fori_loop(0, n_full, body, 0)
    if rem > 0:
        do_rows(n_full * ROWS, rem)


def _pick_nc_tile(nc: int, per_slice_bytes: int, block_budget: int) -> int:
    """Largest (N*C)-tile that fits VMEM, preferring >= 8 parallel grid steps."""
    divisors = [d for d in range(1, nc + 1) if nc % d == 0]
    fitting = [d for d in divisors if d * per_slice_bytes <= block_budget] or [1]
    tb = max(fitting)
    # Prefer >= 8 grid steps (v7x megacore + DMA/compute overlap) as long as
    # each block stays >= ~1 MiB (amortizes the ~0.35 us per-step overhead).
    for d in sorted(fitting, reverse=True):
        if nc // d >= 8 and d * per_slice_bytes >= (1 << 20):
            return d
    return tb


def gaussian_smoothing(x, weight):
    """x: (N, C, H, W), weight: (C, 1, K, K)  ->  (N, C, H-K+1, W-K+1)."""
    N, C, H, W = x.shape
    K = weight.shape[-1]
    Hout, Wout = H - K + 1, W - K + 1
    NC = N * C
    itemsize = jnp.dtype(x.dtype).itemsize

    # Separable 1-D taps.  CONTRACT of this fast path: every channel's kernel
    # is identical and the 2-D kernel is exactly the outer product of its
    # row/column marginals.  Both hold for GaussianSmoothing's construction
    # (normalized outer product of 1-D Gaussians).  Arbitrary per-channel or
    # non-separable weights are NOT supported here.
    w2d = weight[0, 0].astype(jnp.float32)                                   # (K, K)
    w1d = jnp.stack([jnp.sum(w2d, axis=1), jnp.sum(w2d, axis=0)], axis=0)    # (2, K)

    # Native NCHW consumed directly as a free (N*C, H, W) view: no HBM
    # transposes on either side of the pallas_call.
    x_flat = x.reshape(NC, H, W)

    # Per-generation VMEM budget (v5e/v6e: 128 MiB, v7x: 64 MiB per core).
    vmem_cap = 64 << 20
    try:
        info = pltpu.get_tpu_info()
        vmem_cap = int(getattr(info, "vmem_capacity_bytes", vmem_cap)) or vmem_cap
    except Exception:
        pass
    vmem_limit = int(vmem_cap * 0.8)                 # headroom below physical
    block_budget = max(vmem_limit - (8 << 20), 8 << 20)

    # Double-buffered input + output blocks, per (N*C) slice.
    per_slice_bytes = (2 * H * W + 2 * Hout * Wout) * itemsize
    tb = _pick_nc_tile(NC, per_slice_bytes, block_budget)

    cost = pl.CostEstimate(
        flops=2 * K * NC * Hout * (W + Wout),
        transcendentals=0,
        bytes_accessed=(H * W + Hout * Wout) * NC * itemsize,
    )

    out_flat = pl.pallas_call(
        _gaussian_sep_kernel,
        out_shape=jax.ShapeDtypeStruct((NC, Hout, Wout), x.dtype),
        grid_spec=pltpu.PrefetchScalarGridSpec(
            num_scalar_prefetch=0,
            grid=(NC // tb,),
            in_specs=[
                # Shared 1-D taps: whole (2, K) array resident in SMEM.
                pl.BlockSpec(memory_space=pltpu.MemorySpace.SMEM),
                pl.BlockSpec((tb, H, W), lambda l: (l, 0, 0)),
            ],
            out_specs=pl.BlockSpec((tb, Hout, Wout), lambda l: (l, 0, 0)),
        ),
        compiler_params=pltpu.CompilerParams(
            dimension_semantics=("parallel",),
            vmem_limit_bytes=vmem_limit,
        ),
        cost_estimate=cost,
    )(w1d, x_flat)

    return out_flat.reshape(N, C, Hout, Wout)


# ---------------------------------------------------------------------------
# Reference (pure JAX/XLA) for a correctness sanity check
# ---------------------------------------------------------------------------
def gaussian_smoothing_ref(x, weight):
    C = x.shape[1]
    return lax.conv_general_dilated(
        x.astype(jnp.float32),
        weight.astype(jnp.float32),
        window_strides=(1, 1),
        padding="VALID",
        dimension_numbers=("NCHW", "OIHW", "NCHW"),
        feature_group_count=C,
    ).astype(x.dtype)


if __name__ == "__main__":
    N, C, H, W = 2, 4, 16, 16
    K, SIGMA = 3, 1.0

    key = jax.random.PRNGKey(0)
    x = jax.random.normal(key, (N, C, H, W), dtype=jnp.float32)
    weight = make_gaussian_weight(C, K, SIGMA, dim=2)

    y = jax.block_until_ready(gaussian_smoothing(x, weight))
    y_ref = jax.block_until_ready(gaussian_smoothing_ref(x, weight))

    assert y.shape == (N, C, H - K + 1, W - K + 1)
    assert jnp.allclose(y, y_ref, atol=1e-5, rtol=1e-5)

    print("KERNEL_OK")
</pallas_src>

<mosaic_0001>
module attributes {stable_mosaic.version = 11 : i64} {
  func.func @_gaussian_sep_kernel(%arg0: i32, %arg1: memref<2x3xf32, #tpu.memory_space<smem>>, %arg2: memref<8x16x16xf32, #tpu.memory_space<vmem>>, %arg3: memref<8x14x14xf32, #tpu.memory_space<vmem>>) attributes {dimension_semantics = [#tpu.dimension_semantics<parallel>], iteration_bounds = array<i64: 1>, scalar_prefetch = 0 : i64, scratch_operands = 0 : i64, tpu.core_type = #tpu.core_type<tc>, window_params = [{transform_indices = @transform_0, window_bounds = array<i64: 2, 3>}, {transform_indices = @transform_1, window_bounds = array<i64: 8, 16, 16>}, {transform_indices = @transform_2, window_bounds = array<i64: 8, 14, 14>}]} {
    %c0 = arith.constant 0 : index
    %c0_0 = arith.constant 0 : index
    %0 = memref.load %arg1[%c0, %c0_0] : memref<2x3xf32, #tpu.memory_space<smem>>
    %c0_1 = arith.constant 0 : index
    %c0_2 = arith.constant 0 : index
    %c0_3 = arith.constant 0 : index
    %1 = vector.load %arg2[%c0_1, %c0_2, %c0_3] : memref<8x16x16xf32, #tpu.memory_space<vmem>>, vector<8x8x16xf32>
    %2 = vector.broadcast %0 : f32 to vector<8x8x16xf32>
    %3 = arith.mulf %2, %1 : vector<8x8x16xf32>
    %c0_4 = arith.constant 0 : index
    %c1 = arith.constant 1 : index
    %4 = memref.load %arg1[%c0_4, %c1] : memref<2x3xf32, #tpu.memory_space<smem>>
    %c0_5 = arith.constant 0 : index
    %c1_6 = arith.constant 1 : index
    %c0_7 = arith.constant 0 : index
    %5 = vector.load %arg2[%c0_5, %c1_6, %c0_7] : memref<8x16x16xf32, #tpu.memory_space<vmem>>, vector<8x8x16xf32>
    %6 = vector.broadcast %4 : f32 to vector<8x8x16xf32>
    %7 = arith.mulf %6, %5 : vector<8x8x16xf32>
    %8 = arith.addf %3, %7 : vector<8x8x16xf32>
    %c0_8 = arith.constant 0 : index
    %c2 = arith.constant 2 : index
    %9 = memref.load %arg1[%c0_8, %c2] : memref<2x3xf32, #tpu.memory_space<smem>>
    %c0_9 = arith.constant 0 : index
    %c2_10 = arith.constant 2 : index
    %c0_11 = arith.constant 0 : index
    %10 = vector.load %arg2[%c0_9, %c2_10, %c0_11] : memref<8x16x16xf32, #tpu.memory_space<vmem>>, vector<8x8x16xf32>
    %11 = vector.broadcast %9 : f32 to vector<8x8x16xf32>
    %12 = arith.mulf %11, %10 : vector<8x8x16xf32>
    %13 = arith.addf %8, %12 : vector<8x8x16xf32>
    %c1_12 = arith.constant 1 : index
    %c0_13 = arith.constant 0 : index
    %14 = memref.load %arg1[%c1_12, %c0_13] : memref<2x3xf32, #tpu.memory_space<smem>>
    %15 = vector.extract_strided_slice %13 {offsets = [0, 0, 0], sizes = [8, 8, 14], strides = [1, 1, 1]} : vector<8x8x16xf32> to vector<8x8x14xf32>
    %16 = vector.broadcast %14 : f32 to vector<8x8x14xf32>
    %17 = arith.mulf %16, %15 : vector<8x8x14xf32>
    %c1_14 = arith.constant 1 : index
    %c1_15 = arith.constant 1 : index
    %18 = memref.load %arg1[%c1_14, %c1_15] : memref<2x3xf32, #tpu.memory_space<smem>>
    %19 = vector.extract_strided_slice %13 {offsets = [0, 0, 1], sizes = [8, 8, 14], strides = [1, 1, 1]} : vector<8x8x16xf32> to vector<8x8x14xf32>
    %20 = vector.broadcast %18 : f32 to vector<8x8x14xf32>
    %21 = arith.mulf %20, %19 : vector<8x8x14xf32>
    %22 = arith.addf %17, %21 : vector<8x8x14xf32>
    %c1_16 = arith.constant 1 : index
    %c2_17 = arith.constant 2 : index
    %23 = memref.load %arg1[%c1_16, %c2_17] : memref<2x3xf32, #tpu.memory_space<smem>>
    %24 = vector.extract_strided_slice %13 {offsets = [0, 0, 2], sizes = [8, 8, 14], strides = [1, 1, 1]} : vector<8x8x16xf32> to vector<8x8x14xf32>
    %25 = vector.broadcast %23 : f32 to vector<8x8x14xf32>
    %26 = arith.mulf %25, %24 : vector<8x8x14xf32>
    %27 = arith.addf %22, %26 : vector<8x8x14xf32>
    %c0_18 = arith.constant 0 : index
    %c0_19 = arith.constant 0 : index
    %c0_20 = arith.constant 0 : index
    %28 = vector.load %arg3[%c0_18, %c0_19, %c0_20] : memref<8x14x14xf32, #tpu.memory_space<vmem>>, vector<8x8x14xf32>
    tpu.vector_store %arg3[%c0_18, %c0_19, %c0_20], %27 {strides = array<i32>} : memref<8x14x14xf32, #tpu.memory_space<vmem>>, vector<8x8x14xf32>,
    %c0_21 = arith.constant 0 : index
    %c0_22 = arith.constant 0 : index
    %29 = memref.load %arg1[%c0_21, %c0_22] : memref<2x3xf32, #tpu.memory_space<smem>>
    %c0_23 = arith.constant 0 : index
    %c8 = arith.constant 8 : index
    %c0_24 = arith.constant 0 : index
    %30 = vector.load %arg2[%c0_23, %c8, %c0_24] : memref<8x16x16xf32, #tpu.memory_space<vmem>>, vector<8x6x16xf32>
    %31 = vector.broadcast %29 : f32 to vector<8x6x16xf32>
    %32 = arith.mulf %31, %30 : vector<8x6x16xf32>
    %c0_25 = arith.constant 0 : index
    %c1_26 = arith.constant 1 : index
    %33 = memref.load %arg1[%c0_25, %c1_26] : memref<2x3xf32, #tpu.memory_space<smem>>
    %c0_27 = arith.constant 0 : index
    %c9 = arith.constant 9 : index
    %c0_28 = arith.constant 0 : index
    %34 = vector.load %arg2[%c0_27, %c9, %c0_28] : memref<8x16x16xf32, #tpu.memory_space<vmem>>, vector<8x6x16xf32>
    %35 = vector.broadcast %33 : f32 to vector<8x6x16xf32>
    %36 = arith.mulf %35, %34 : vector<8x6x16xf32>
    %37 = arith.addf %32, %36 : vector<8x6x16xf32>
    %c0_29 = arith.constant 0 : index
    %c2_30 = arith.constant 2 : index
    %38 = memref.load %arg1[%c0_29, %c2_30] : memref<2x3xf32, #tpu.memory_space<smem>>
    %c0_31 = arith.constant 0 : index
    %c10 = arith.constant 10 : index
    %c0_32 = arith.constant 0 : index
    %39 = vector.load %arg2[%c0_31, %c10, %c0_32] : memref<8x16x16xf32, #tpu.memory_space<vmem>>, vector<8x6x16xf32>
    %40 = vector.broadcast %38 : f32 to vector<8x6x16xf32>
    %41 = arith.mulf %40, %39 : vector<8x6x16xf32>
    %42 = arith.addf %37, %41 : vector<8x6x16xf32>
    %c1_33 = arith.constant 1 : index
    %c0_34 = arith.constant 0 : index
    %43 = memref.load %arg1[%c1_33, %c0_34] : memref<2x3xf32, #tpu.memory_space<smem>>
    %44 = vector.extract_strided_slice %42 {offsets = [0, 0, 0], sizes = [8, 6, 14], strides = [1, 1, 1]} : vector<8x6x16xf32> to vector<8x6x14xf32>
    %45 = vector.broadcast %43 : f32 to vector<8x6x14xf32>
    %46 = arith.mulf %45, %44 : vector<8x6x14xf32>
    %c1_35 = arith.constant 1 : index
    %c1_36 = arith.constant 1 : index
    %47 = memref.load %arg1[%c1_35, %c1_36] : memref<2x3xf32, #tpu.memory_space<smem>>
    %48 = vector.extract_strided_slice %42 {offsets = [0, 0, 1], sizes = [8, 6, 14], strides = [1, 1, 1]} : vector<8x6x16xf32> to vector<8x6x14xf32>
    %49 = vector.broadcast %47 : f32 to vector<8x6x14xf32>
    %50 = arith.mulf %49, %48 : vector<8x6x14xf32>
    %51 = arith.addf %46, %50 : vector<8x6x14xf32>
    %c1_37 = arith.constant 1 : index
    %c2_38 = arith.constant 2 : index
    %52 = memref.load %arg1[%c1_37, %c2_38] : memref<2x3xf32, #tpu.memory_space<smem>>
    %53 = vector.extract_strided_slice %42 {offsets = [0, 0, 2], sizes = [8, 6, 14], strides = [1, 1, 1]} : vector<8x6x16xf32> to vector<8x6x14xf32>
    %54 = vector.broadcast %52 : f32 to vector<8x6x14xf32>
    %55 = arith.mulf %54, %53 : vector<8x6x14xf32>
    %56 = arith.addf %51, %55 : vector<8x6x14xf32>
    %c0_39 = arith.constant 0 : index
    %c8_40 = arith.constant 8 : index
    %c0_41 = arith.constant 0 : index
    %57 = vector.load %arg3[%c0_39, %c8_40, %c0_41] : memref<8x14x14xf32, #tpu.memory_space<vmem>>, vector<8x6x14xf32>
    tpu.vector_store %arg3[%c0_39, %c8_40, %c0_41], %56 {strides = array<i32>} : memref<8x14x14xf32, #tpu.memory_space<vmem>>, vector<8x6x14xf32>,
    return
  }
  func.func @transform_0(%arg0: i32) -> (i32, i32) {
    %c0_i32 = arith.constant 0 : i32
    %c0_i32_0 = arith.constant 0 : i32
    %c0_i32_1 = arith.constant 0 : i32
    return %c0_i32, %c0_i32_0 : i32, i32
  }
  func.func @transform_1(%arg0: i32) -> (i32, i32, i32) {
    %c0_i32 = arith.constant 0 : i32
    %c0_i32_0 = arith.constant 0 : i32
    %c0_i32_1 = arith.constant 0 : i32
    return %arg0, %c0_i32, %c0_i32_0 : i32, i32, i32
  }
  func.func @transform_2(%arg0: i32) -> (i32, i32, i32) {
    %c0_i32 = arith.constant 0 : i32
    %c0_i32_0 = arith.constant 0 : i32
    %c0_i32_1 = arith.constant 0 : i32
    return %arg0, %c0_i32, %c0_i32_0 : i32, i32, i32
  }
}

</mosaic_0001>

<llo_original>
// kernel: tpu_custom_call.1
$region0: #{tpu_custom_call.1}
  #allocation0 [shape = 'u32[]', space=smem, size = 0x4, offset = 0x4, fixed_abs, tag = 'smem constant byte address 0x4 - core index']
  #allocation1 [shape = 'u32[144,128]{1,0:T(1,128)}', space=vmem, size = 0x12000, scoped, tag = 'internal scratch']
  %s0 = inlined_call_operand.hbm [shape: f32[2,3], index: 0, kind: input, shape index: {}]
  %s1 = inlined_call_operand.hbm [shape: f32[8,16,16], index: 1, kind: input, shape index: {}]
  %s2 = inlined_call_operand.vmem [shape: f32[8,14,14], index: 2, kind: output, shape index: {}]
  %s3 = sld [smem:[#allocation0]]
  $region26: #{tpu_custom_call.1} parent=0
    _
  %s5 = ssub.s32 1, %s3
  %s6 = scalar_select 0, %s5, %s3
  $region1: #{tpu_custom_call.1} parent=0
    #allocation2 [shape = 'u8[1024]{0}', space=smem, size = 0x400, scoped, tag = 'input window, operand 0, single buffered']
    #allocation3 [shape = 's32[1]{0}', space=sflag, size = 0x4, scoped, tag = 'scoped memory for tpu_custom_call.1']
    #allocation4 [shape = 's32[1]{0}', space=sflag, size = 0x4, scoped, tag = 'scoped memory for tpu_custom_call.1']
    #allocation5 [shape = 'u8[65536]{0}', space=vmem, size = 0x10000, scoped, tag = 'input window, operand 1, single buffered']
    %7 = vsyncpa [#allocation4], 0
    %8 = vsyncpa [#allocation3], 0
    // Predicated region
    $region2: #{tpu_custom_call.1} parent=1 // pred_check
      _
    $region3: #{tpu_custom_call.1} parent=1 // pred_check_branch
      %10 = sbr.rel (0) target = $region5
    $region4: #{tpu_custom_call.1} parent=1 // pred_region
      %s12 = ssub.s32 32, 32
      %13 = vsyncadd [#allocation4], %s12
      %16 = dma.hbm_to_smem %s0, 32, [#allocation2], [#allocation4]
    $region5: #{tpu_custom_call.1} parent=1 // pred_fallthru
      _
    // Predicated region
    $region6: #{tpu_custom_call.1} parent=1 // pred_check
      _
    $region7: #{tpu_custom_call.1} parent=1 // pred_check_branch
      %18 = sbr.rel (0) target = $region9
    $region8: #{tpu_custom_call.1} parent=1 // pred_region
      %s20 = ssub.s32 2048, 2048
      %21 = vsyncadd [#allocation3], %s20
      %s22 = sshll.u32 [#allocation5], 4
      %s23 = int_to_ptr.vmem [resolvable:$true] %s22
      %28 = dma.hbm_to_vmem [thread:$0]  %s1, 2048, %s23, [#allocation3], 128, 128, 8
    $region9: #{tpu_custom_call.1} parent=1 // pred_fallthru
      _
    // Predicated region
    $region10: #{tpu_custom_call.1} parent=1 // pred_check
      _
    $region11: #{tpu_custom_call.1} parent=1 // pred_check_branch
      %30 = sbr.rel (0) target = $region13
    $region12: #{tpu_custom_call.1} parent=1 // pred_region
      %31 = dma.done [#allocation4], 32
    $region13: #{tpu_custom_call.1} parent=1 // pred_fallthru
      _
    // Predicated region
    $region14: #{tpu_custom_call.1} parent=1 // pred_check
      _
    $region15: #{tpu_custom_call.1} parent=1 // pred_check_branch
      %33 = sbr.rel (0) target = $region17
    $region16: #{tpu_custom_call.1} parent=1 // pred_region
      %34 = dma.done [#allocation3], 2048
    $region17: #{tpu_custom_call.1} parent=1 // pred_fallthru
      _
    %35 = sfence
    %s36 = sld [smem:[#allocation2]]
    %v37 = vld [vmem:[#allocation5] sm:$0xff]
    %v38 = vld [vmem:[#allocation5 + $0x10] sm:$0xff]
    %v39 = vld [vmem:[#allocation5 + $0x20] sm:$0xff]
    %v40 = vld [vmem:[#allocation5 + $0x30] sm:$0xff]
    %v41 = vld [vmem:[#allocation5 + $0x40] sm:$0xff]
    %v42 = vld [vmem:[#allocation5 + $0x50] sm:$0xff]
    %v43 = vld [vmem:[#allocation5 + $0x60] sm:$0xff]
    %v44 = vld [vmem:[#allocation5 + $0x70] sm:$0xff]
    %v45 = vstv %s36
    %v46 = vmul.f32 %v45, %v37
    %v47 = vmul.f32 %v45, %v38
    %v48 = vmul.f32 %v45, %v39
    %v49 = vmul.f32 %v45, %v40
    %v50 = vmul.f32 %v45, %v41
    %v51 = vmul.f32 %v45, %v42
    %v52 = vmul.f32 %v45, %v43
    %v53 = vmul.f32 %v45, %v44
    %s54 = sld [smem:[#allocation2 + $0x1]]
    %v55 = vld [vmem:[#allocation5 + $0x1] sm:$0xff]
    %v56 = vld [vmem:[#allocation5 + $0x11] sm:$0xff]
    %v57 = vld [vmem:[#allocation5 + $0x21] sm:$0xff]
    %v58 = vld [vmem:[#allocation5 + $0x31] sm:$0xff]
    %v59 = vld [vmem:[#allocation5 + $0x41] sm:$0xff]
    %v60 = vld [vmem:[#allocation5 + $0x51] sm:$0xff]
    %v61 = vld [vmem:[#allocation5 + $0x61] sm:$0xff]
    %v62 = vld [vmem:[#allocation5 + $0x71] sm:$0xff]
    %v63 = vstv %s54
    %v64 = vmul.f32 %v63, %v55
    %v65 = vmul.f32 %v63, %v56
    %v66 = vmul.f32 %v63, %v57
    %v67 = vmul.f32 %v63, %v58
    %v68 = vmul.f32 %v63, %v59
    %v69 = vmul.f32 %v63, %v60
    %v70 = vmul.f32 %v63, %v61
    %v71 = vmul.f32 %v63, %v62
    %v72 = vadd.f32 %v46, %v64
    %v73 = vadd.f32 %v47, %v65
    %v74 = vadd.f32 %v48, %v66
    %v75 = vadd.f32 %v49, %v67
    %v76 = vadd.f32 %v50, %v68
    %v77 = vadd.f32 %v51, %v69
    %v78 = vadd.f32 %v52, %v70
    %v79 = vadd.f32 %v53, %v71
    %s80 = sld [smem:[#allocation2 + $0x2]]
    %v81 = vld [vmem:[#allocation5 + $0x2] sm:$0xff]
    %v82 = vld [vmem:[#allocation5 + $0x12] sm:$0xff]
    %v83 = vld [vmem:[#allocation5 + $0x22] sm:$0xff]
    %v84 = vld [vmem:[#allocation5 + $0x32] sm:$0xff]
    %v85 = vld [vmem:[#allocation5 + $0x42] sm:$0xff]
    %v86 = vld [vmem:[#allocation5 + $0x52] sm:$0xff]
    %v87 = vld [vmem:[#allocation5 + $0x62] sm:$0xff]
    %v88 = vld [vmem:[#allocation5 + $0x72] sm:$0xff]
    %v89 = vstv %s80
    %v90 = vmul.f32 %v89, %v81
    %v91 = vmul.f32 %v89, %v82
    %v92 = vmul.f32 %v89, %v83
    %v93 = vmul.f32 %v89, %v84
    %v94 = vmul.f32 %v89, %v85
    %v95 = vmul.f32 %v89, %v86
    %v96 = vmul.f32 %v89, %v87
    %v97 = vmul.f32 %v89, %v88
    %v98 = vadd.f32 %v72, %v90
    %v99 = vadd.f32 %v73, %v91
    %v100 = vadd.f32 %v74, %v92
    %v101 = vadd.f32 %v75, %v93
    %v102 = vadd.f32 %v76, %v94
    %v103 = vadd.f32 %v77, %v95
    %v104 = vadd.f32 %v78, %v96
    %v105 = vadd.f32 %v79, %v97
    %s106 = sld [smem:[#allocation2 + $0x80]]
    %v107 = vstv %s106
    %v108 = vmul.f32 %v107, %v98
    %v109 = vmul.f32 %v107, %v99
    %v110 = vmul.f32 %v107, %v100
    %v111 = vmul.f32 %v107, %v101
    %v112 = vmul.f32 %v107, %v102
    %v113 = vmul.f32 %v107, %v103
    %v114 = vmul.f32 %v107, %v104
    %v115 = vmul.f32 %v107, %v105
    %s116 = sld [smem:[#allocation2 + $0x81]]
    %v117 = vstv %s116
    %v118 = vmul.f32 %v117, %v98
    %v119 = vmul.f32 %v117, %v99
    %v120 = vmul.f32 %v117, %v100
    %v121 = vmul.f32 %v117, %v101
    %v122 = vmul.f32 %v117, %v102
    %v123 = vmul.f32 %v117, %v103
    %v124 = vmul.f32 %v117, %v104
    %v125 = vmul.f32 %v117, %v105
    %134 = vrot.lane.b32.xlu0 %v118, 127
    %v135 = vpop.permute.xlu0 %134
    %136 = vrot.lane.b32.xlu0 %v119, 127
    %v137 = vpop.permute.xlu0 %136
    %138 = vrot.lane.b32.xlu0 %v120, 127
    %v139 = vpop.permute.xlu0 %138
    %140 = vrot.lane.b32.xlu0 %v121, 127
    %v141 = vpop.permute.xlu0 %140
    %142 = vrot.lane.b32.xlu0 %v122, 127
    %v143 = vpop.permute.xlu0 %142
    %144 = vrot.lane.b32.xlu0 %v123, 127
    %v145 = vpop.permute.xlu0 %144
    %146 = vrot.lane.b32.xlu0 %v124, 127
    %v147 = vpop.permute.xlu0 %146
    %148 = vrot.lane.b32.xlu0 %v125, 127
    %v149 = vpop.permute.xlu0 %148
    %v158 = vadd.f32 %v108, %v135
    %v159 = vadd.f32 %v109, %v137
    %v160 = vadd.f32 %v110, %v139
    %v161 = vadd.f32 %v111, %v141
    %v162 = vadd.f32 %v112, %v143
    %v163 = vadd.f32 %v113, %v145
    %v164 = vadd.f32 %v114, %v147
    %v165 = vadd.f32 %v115, %v149
    %s166 = sld [smem:[#allocation2 + $0x82]]
    %v167 = vstv %s166
    %v168 = vmul.f32 %v167, %v98
    %v169 = vmul.f32 %v167, %v99
    %v170 = vmul.f32 %v167, %v100
    %v171 = vmul.f32 %v167, %v101
    %v172 = vmul.f32 %v167, %v102
    %v173 = vmul.f32 %v167, %v103
    %v174 = vmul.f32 %v167, %v104
    %v175 = vmul.f32 %v167, %v105
    %184 = vrot.lane.b32.xlu0 %v168, 126
    %v185 = vpop.permute.xlu0 %184
    %186 = vrot.lane.b32.xlu0 %v169, 126
    %v187 = vpop.permute.xlu0 %186
    %188 = vrot.lane.b32.xlu0 %v170, 126
    %v189 = vpop.permute.xlu0 %188
    %190 = vrot.lane.b32.xlu0 %v171, 126
    %v191 = vpop.permute.xlu0 %190
    %192 = vrot.lane.b32.xlu0 %v172, 126
    %v193 = vpop.permute.xlu0 %192
    %194 = vrot.lane.b32.xlu0 %v173, 126
    %v195 = vpop.permute.xlu0 %194
    %196 = vrot.lane.b32.xlu0 %v174, 126
    %v197 = vpop.permute.xlu0 %196
    %198 = vrot.lane.b32.xlu0 %v175, 126
    %v199 = vpop.permute.xlu0 %198
    %v208 = vadd.f32 %v158, %v185
    %v209 = vadd.f32 %v159, %v187
    %v210 = vadd.f32 %v160, %v189
    %v211 = vadd.f32 %v161, %v191
    %v212 = vadd.f32 %v162, %v193
    %v213 = vadd.f32 %v163, %v195
    %v214 = vadd.f32 %v164, %v197
    %v215 = vadd.f32 %v165, %v199
    %vm216 = vcmask 113664
    %217 = vst.msk [vmem:[%s2] sm:$0xff] %vm216, %v208
    %218 = vst.msk [vmem:[%s2 + $0x10] sm:$0xff] %vm216, %v209
    %219 = vst.msk [vmem:[%s2 + $0x20] sm:$0xff] %vm216, %v210
    %220 = vst.msk [vmem:[%s2 + $0x30] sm:$0xff] %vm216, %v211
    %221 = vst.msk [vmem:[%s2 + $0x40] sm:$0xff] %vm216, %v212
    %222 = vst.msk [vmem:[%s2 + $0x50] sm:$0xff] %vm216, %v213
    %223 = vst.msk [vmem:[%s2 + $0x60] sm:$0xff] %vm216, %v214
    %224 = vst.msk [vmem:[%s2 + $0x70] sm:$0xff] %vm216, %v215
    %s225 = sld [smem:[#allocation2]]
    %v226 = vld [vmem:[#allocation5 + $0x8] sm:$0x3f]
    %v227 = vld [vmem:[#allocation5 + $0x18] sm:$0x3f]
    %v228 = vld [vmem:[#allocation5 + $0x28] sm:$0x3f]
    %v229 = vld [vmem:[#allocation5 + $0x38] sm:$0x3f]
    %v230 = vld [vmem:[#allocation5 + $0x48] sm:$0x3f]
    %v231 = vld [vmem:[#allocation5 + $0x58] sm:$0x3f]
    %v232 = vld [vmem:[#allocation5 + $0x68] sm:$0x3f]
    %v233 = vld [vmem:[#allocation5 + $0x78] sm:$0x3f]
    %v234 = vstv %s225
    %v235 = vmul.f32 %v234, %v226
    %v236 = vmul.f32 %v234, %v227
    %v237 = vmul.f32 %v234, %v228
    %v238 = vmul.f32 %v234, %v229
    %v239 = vmul.f32 %v234, %v230
    %v240 = vmul.f32 %v234, %v231
    %v241 = vmul.f32 %v234, %v232
    %v242 = vmul.f32 %v234, %v233
    %s243 = sld [smem:[#allocation2 + $0x1]]
    %v244 = vld [vmem:[#allocation5 + $0x9] sm:$0x3f]
    %v245 = vld [vmem:[#allocation5 + $0x19] sm:$0x3f]
    %v246 = vld [vmem:[#allocation5 + $0x29] sm:$0x3f]
    %v247 = vld [vmem:[#allocation5 + $0x39] sm:$0x3f]
    %v248 = vld [vmem:[#allocation5 + $0x49] sm:$0x3f]
    %v249 = vld [vmem:[#allocation5 + $0x59] sm:$0x3f]
    %v250 = vld [vmem:[#allocation5 + $0x69] sm:$0x3f]
    %v251 = vld [vmem:[#allocation5 + $0x79] sm:$0x3f]
    %v252 = vstv %s243
    %v253 = vmul.f32 %v252, %v244
    %v254 = vmul.f32 %v252, %v245
    %v255 = vmul.f32 %v252, %v246
    %v256 = vmul.f32 %v252, %v247
    %v257 = vmul.f32 %v252, %v248
    %v258 = vmul.f32 %v252, %v249
    %v259 = vmul.f32 %v252, %v250
    %v260 = vmul.f32 %v252, %v251
    %v261 = vadd.f32 %v235, %v253
    %v262 = vadd.f32 %v236, %v254
    %v263 = vadd.f32 %v237, %v255
    %v264 = vadd.f32 %v238, %v256
    %v265 = vadd.f32 %v239, %v257
    %v266 = vadd.f32 %v240, %v258
    %v267 = vadd.f32 %v241, %v259
    %v268 = vadd.f32 %v242, %v260
    %s269 = sld [smem:[#allocation2 + $0x2]]
    %v270 = vld [vmem:[#allocation5 + $0xa] sm:$0x3f]
    %v271 = vld [vmem:[#allocation5 + $0x1a] sm:$0x3f]
    %v272 = vld [vmem:[#allocation5 + $0x2a] sm:$0x3f]
    %v273 = vld [vmem:[#allocation5 + $0x3a] sm:$0x3f]
    %v274 = vld [vmem:[#allocation5 + $0x4a] sm:$0x3f]
    %v275 = vld [vmem:[#allocation5 + $0x5a] sm:$0x3f]
    %v276 = vld [vmem:[#allocation5 + $0x6a] sm:$0x3f]
    %v277 = vld [vmem:[#allocation5 + $0x7a] sm:$0x3f]
    %v278 = vstv %s269
    %v279 = vmul.f32 %v278, %v270
    %v280 = vmul.f32 %v278, %v271
    %v281 = vmul.f32 %v278, %v272
    %v282 = vmul.f32 %v278, %v273
    %v283 = vmul.f32 %v278, %v274
    %v284 = vmul.f32 %v278, %v275
    %v285 = vmul.f32 %v278, %v276
    %v286 = vmul.f32 %v278, %v277
    %v287 = vadd.f32 %v261, %v279
    %v288 = vadd.f32 %v262, %v280
    %v289 = vadd.f32 %v263, %v281
    %v290 = vadd.f32 %v264, %v282
    %v291 = vadd.f32 %v265, %v283
    %v292 = vadd.f32 %v266, %v284
    %v293 = vadd.f32 %v267, %v285
    %v294 = vadd.f32 %v268, %v286
    %s295 = sld [smem:[#allocation2 + $0x80]]
    %v296 = vstv %s295
    %v297 = vmul.f32 %v296, %v287
    %v298 = vmul.f32 %v296, %v288
    %v299 = vmul.f32 %v296, %v289
    %v300 = vmul.f32 %v296, %v290
    %v301 = vmul.f32 %v296, %v291
    %v302 = vmul.f32 %v296, %v292
    %v303 = vmul.f32 %v296, %v293
    %v304 = vmul.f32 %v296, %v294
    %s305 = sld [smem:[#allocation2 + $0x81]]
    %v306 = vstv %s305
    %v307 = vmul.f32 %v306, %v287
    %v308 = vmul.f32 %v306, %v288
    %v309 = vmul.f32 %v306, %v289
    %v310 = vmul.f32 %v306, %v290
    %v311 = vmul.f32 %v306, %v291
    %v312 = vmul.f32 %v306, %v292
    %v313 = vmul.f32 %v306, %v293
    %v314 = vmul.f32 %v306, %v294
    %323 = vrot.lane.b32.xlu0 %v307, 127
    %v324 = vpop.permute.xlu0 %323
    %325 = vrot.lane.b32.xlu0 %v308, 127
    %v326 = vpop.permute.xlu0 %325
    %327 = vrot.lane.b32.xlu0 %v309, 127
    %v328 = vpop.permute.xlu0 %327
    %329 = vrot.lane.b32.xlu0 %v310, 127
    %v330 = vpop.permute.xlu0 %329
    %331 = vrot.lane.b32.xlu0 %v311, 127
    %v332 = vpop.permute.xlu0 %331
    %333 = vrot.lane.b32.xlu0 %v312, 127
    %v334 = vpop.permute.xlu0 %333
    %335 = vrot.lane.b32.xlu0 %v313, 127
    %v336 = vpop.permute.xlu0 %335
    %337 = vrot.lane.b32.xlu0 %v314, 127
    %v338 = vpop.permute.xlu0 %337
    %v347 = vadd.f32 %v297, %v324
    %v348 = vadd.f32 %v298, %v326
    %v349 = vadd.f32 %v299, %v328
    %v350 = vadd.f32 %v300, %v330
    %v351 = vadd.f32 %v301, %v332
    %v352 = vadd.f32 %v302, %v334
    %v353 = vadd.f32 %v303, %v336
    %v354 = vadd.f32 %v304, %v338
    %s355 = sld [smem:[#allocation2 + $0x82]]
    %v356 = vstv %s355
    %v357 = vmul.f32 %v356, %v287
    %v358 = vmul.f32 %v356, %v288
    %v359 = vmul.f32 %v356, %v289
    %v360 = vmul.f32 %v356, %v290
    %v361 = vmul.f32 %v356, %v291
    %v362 = vmul.f32 %v356, %v292
    %v363 = vmul.f32 %v356, %v293
    %v364 = vmul.f32 %v356, %v294
    %373 = vrot.lane.b32.xlu0 %v357, 126
    %v374 = vpop.permute.xlu0 %373
    %375 = vrot.lane.b32.xlu0 %v358, 126
    %v376 = vpop.permute.xlu0 %375
    %377 = vrot.lane.b32.xlu0 %v359, 126
    %v378 = vpop.permute.xlu0 %377
    %379 = vrot.lane.b32.xlu0 %v360, 126
    %v380 = vpop.permute.xlu0 %379
    %381 = vrot.lane.b32.xlu0 %v361, 126
    %v382 = vpop.permute.xlu0 %381
    %383 = vrot.lane.b32.xlu0 %v362, 126
    %v384 = vpop.permute.xlu0 %383
    %385 = vrot.lane.b32.xlu0 %v363, 126
    %v386 = vpop.permute.xlu0 %385
    %387 = vrot.lane.b32.xlu0 %v364, 126
    %v388 = vpop.permute.xlu0 %387
    %v397 = vadd.f32 %v347, %v374
    %v398 = vadd.f32 %v348, %v376
    %v399 = vadd.f32 %v349, %v378
    %v400 = vadd.f32 %v350, %v380
    %v401 = vadd.f32 %v351, %v382
    %v402 = vadd.f32 %v352, %v384
    %v403 = vadd.f32 %v353, %v386
    %v404 = vadd.f32 %v354, %v388
    %vm405 = vcmask 111616
    %406 = vst.msk [vmem:[%s2 + $0x8] sm:$0x3f] %vm405, %v397
    %407 = vst.msk [vmem:[%s2 + $0x18] sm:$0x3f] %vm405, %v398
    %408 = vst.msk [vmem:[%s2 + $0x28] sm:$0x3f] %vm405, %v399
    %409 = vst.msk [vmem:[%s2 + $0x38] sm:$0x3f] %vm405, %v400
    %410 = vst.msk [vmem:[%s2 + $0x48] sm:$0x3f] %vm405, %v401
    %411 = vst.msk [vmem:[%s2 + $0x58] sm:$0x3f] %vm405, %v402
    %412 = vst.msk [vmem:[%s2 + $0x68] sm:$0x3f] %vm405, %v403
    %413 = vst.msk [vmem:[%s2 + $0x78] sm:$0x3f] %vm405, %v404
    // Predicated region
    $region18: #{tpu_custom_call.1} parent=1 // pred_check
      _
    $region19: #{tpu_custom_call.1} parent=1 // pred_check_branch
      %415 = sbr.rel (0) target = $region21
    $region20: #{tpu_custom_call.1} parent=1 // pred_region
      _
    $region21: #{tpu_custom_call.1} parent=1 // pred_fallthru
      _
    // Predicated region
    $region22: #{tpu_custom_call.1} parent=1 // pred_check
      _
    $region23: #{tpu_custom_call.1} parent=1 // pred_check_branch
      %417 = sbr.rel (0) target = $region25
    $region24: #{tpu_custom_call.1} parent=1 // pred_region
      _
    $region25: #{tpu_custom_call.1} parent=1 // pred_fallthru
      _
    %418 = vsyncpa [#allocation3], 1
    %419 = vsyncpa [#allocation4], 1

</llo_original>
